<compile_context>
chip_gen: v7x
topology: tpu7x:2x2x1
jax: 0.10.0
libtpu: 0.0.40
codegen_flags: <defaults>
</compile_context>

<pallas_src>
import functools

import jax
import jax.numpy as jnp
from jax import lax
from jax.experimental import pallas as pl
from jax.experimental.pallas import tpu as pltpu


def _round_up(x, m):
    return ((x + m - 1) // m) * m


def _vmem_capacity_bytes():
    try:
        return int(pltpu.get_tpu_info().vmem_capacity_bytes)
    except Exception:
        return 64 * 1024 * 1024  # conservative (v7x-sized) fallback


# ---------------------------------------------------------------------------
# Kernel 1: similarity matrix  sim[b, n] = <x[b], x_train[n]>
#   grid = (N_pad // tn  [parallel],  D_pad // td  [arbitrary/reduction])
#   x block:       (nk, B, td) bf16, index (0,0,0) -> resident, fetched once
#   x_train block: (tn, td)    bf16                 (contract last dims, no .T)
#   out block:     (B, tn)     f32, resident across the reduction axis and
#                  used directly as the accumulator (out dtype == acc dtype).
# ---------------------------------------------------------------------------
def _sim_kernel(x_ref, xt_ref, out_ref):
    k = pl.program_id(1)

    @pl.when(k == 0)
    def _():
        out_ref[...] = jnp.zeros_like(out_ref)

    out_ref[...] += lax.dot_general(
        x_ref[k],                      # (B, td) bf16, resident query chunk k
        xt_ref[...],                   # (tn, td) bf16
        dimension_numbers=(((1,), (1,)), ((), ())),   # contract feature dim
        preferred_element_type=jnp.float32,
    )


def _sim_vmem_bytes(B, d_pad, tn, td):
    x_bytes = 2 * B * d_pad * 2        # resident bf16 queries (counted x2 for safety)
    xt_bytes = 2 * tn * td * 2         # double-buffered bf16 x_train tile
    out_bytes = 2 * B * tn * 4         # double-buffered resident f32 output tile
    return x_bytes + xt_bytes + out_bytes


def _pick_td(d_pad):
    if d_pad <= 2048:
        return d_pad
    for td in (2048, 1024, 512, 256, 128):
        if d_pad % td == 0:
            return td
    return 128  # unreachable: d_pad is always a multiple of 128


def _pick_tn(n_pad, d_pad, td, B, budget):
    cands = [t for t in (8192, 4096, 2048, 1024, 512, 256, 128)
             if t <= n_pad and n_pad % t == 0]
    if not cands:
        cands = [n_pad]
    fitting = [t for t in cands if _sim_vmem_bytes(B, d_pad, t, td) <= budget]
    if not fitting:
        # TODO(synk): tile the batch axis for enormous B instead of hoping the
        # smallest train tile fits.
        fitting = [min(cands)]
    # Prefer even step counts >= 2 so v7x's two TensorCores split the
    # "parallel" axis evenly (harmless extra ~0.35us/step on v5e/v6e).
    even = [t for t in fitting if (n_pad // t) >= 2 and (n_pad // t) % 2 == 0]
    if even:
        return max(even)
    multi = [t for t in fitting if (n_pad // t) >= 2]
    if multi:
        return max(multi)
    return max(fitting)


def similarity_matrix(x_bf, xt_bf):
    """x_bf: (B, D_pad) bf16 queries; xt_bf: (N_pad, D_pad) bf16 train set."""
    B, d_pad = x_bf.shape
    n_pad, d_pad2 = xt_bf.shape
    assert d_pad == d_pad2, "feature dims must match"

    cap = _vmem_capacity_bytes()
    budget = min(int(cap * 0.7), cap - 24 * 1024 * 1024)
    td = _pick_td(d_pad)
    tn = _pick_tn(n_pad, d_pad, td, B, budget)
    nk = d_pad // td

    need = _sim_vmem_bytes(B, d_pad, tn, td)
    vmem_limit = int(min(cap - 8 * 1024 * 1024,
                         max(32 * 1024 * 1024, need + 16 * 1024 * 1024)))

    # Tiny relayout of the query batch only (B*D bf16) so the kernel selects
    # feature chunks via a leading-axis index (no dynamic lane slicing).
    x_r = jnp.swapaxes(x_bf.reshape(B, nk, td), 0, 1)   # (nk, B, td)

    return pl.pallas_call(
        _sim_kernel,
        out_shape=jax.ShapeDtypeStruct((B, n_pad), jnp.float32),
        grid=(n_pad // tn, nk),
        in_specs=[
            pl.BlockSpec((nk, B, td), lambda j, k: (0, 0, 0)),  # resident queries
            pl.BlockSpec((tn, td), lambda j, k: (j, k)),        # streamed train tiles
        ],
        out_specs=pl.BlockSpec((B, tn), lambda j, k: (0, j)),
        compiler_params=pltpu.CompilerParams(
            dimension_semantics=("parallel", "arbitrary"),
            vmem_limit_bytes=vmem_limit,
        ),
    )(x_r, xt_bf)


# ---------------------------------------------------------------------------
# Kernel 2: neighbour-weighted class scores (transposed layout).
#   scores_t[c, b] = sum_k ew[k, b] * [labels[k, b] == c]
#   Classes on sublanes (tile tc), batch on lanes; per-neighbour contribution
#   is a leading-axis slice + compare/select/add.  No (B, K, C) intermediate.
#   grid = (C_pad // tc,)
# ---------------------------------------------------------------------------
def _score_kernel(ew_ref, lbl_ref, out_ref):
    tc, tb = out_ref.shape
    knn_k = ew_ref.shape[0]
    c0 = pl.program_id(0) * tc
    class_ids = c0 + lax.broadcasted_iota(jnp.int32, (tc, 1), 0)   # (tc, 1)

    def body(k, acc):
        lbl_k = lbl_ref[pl.ds(k, 1), :]                            # (1, B) i32
        ew_k = ew_ref[pl.ds(k, 1), :]                              # (1, B) f32
        return acc + jnp.where(lbl_k == class_ids, ew_k, 0.0)      # (tc, B)

    out_ref[...] = lax.fori_loop(0, knn_k, body,
                                 jnp.zeros((tc, tb), jnp.float32))


def knn_scores(ew_t, lbl_t, *, num_classes):
    """ew_t, lbl_t: (K, B). Returns (B, num_classes) f32 class scores."""
    K, B = ew_t.shape
    c_pad = _round_up(num_classes, 128)
    if c_pad <= 1024:
        tc = c_pad                      # single wide class tile
    else:
        tc = next(t for t in (1024, 512, 256, 128) if c_pad % t == 0)

    scores_t = pl.pallas_call(
        _score_kernel,
        out_shape=jax.ShapeDtypeStruct((c_pad, B), jnp.float32),
        grid=(c_pad // tc,),
        in_specs=[
            pl.BlockSpec((K, B), lambda c: (0, 0)),   # resident neighbour weights
            pl.BlockSpec((K, B), lambda c: (0, 0)),   # resident neighbour labels
        ],
        out_specs=pl.BlockSpec((tc, B), lambda c: (c, 0)),
        compiler_params=pltpu.CompilerParams(
            dimension_semantics=("parallel",),
        ),
    )(ew_t.astype(jnp.float32), lbl_t.astype(jnp.int32))
    return scores_t[:num_classes, :].T   # drop padded classes, back to (B, C)


# ---------------------------------------------------------------------------
# Full forward (mirrors KNNClassifier.forward after fit()).
# ---------------------------------------------------------------------------
def _knn_forward(x, xt_bf16, y_train, *, num_classes, knn_k, knn_t, n_train):
    B, d = x.shape
    d_pad = xt_bf16.shape[1]
    if d_pad != d:
        x = jnp.pad(x, ((0, 0), (0, d_pad - d)))
    x_bf = x.astype(jnp.bfloat16)        # per-call cast of the small query batch only

    # sim_matrix = x @ x_train.T  (Pallas kernel; bf16 stream, f32 MXU accumulate)
    sim = similarity_matrix(x_bf, xt_bf16)[:, :n_train]          # drop padded rows

    # TODO(synk): top-k has no clean Pallas TPU primitive; plain JAX (could be
    # fused per train tile to avoid the (B, N) HBM round-trip).
    sim_weight, sim_indices = lax.top_k(sim, knn_k)               # (B, K)
    sim_labels = jnp.take(y_train, sim_indices)                   # (B, K) i32

    # exp((w - rowmax)/T): subtracting the row max is a positive per-row
    # rescaling, so the final argsort (pred_labels) is unchanged while exp
    # never overflows for unnormalized features.  Computed once here rather
    # than once per class tile inside the kernel.
    rowmax = jnp.max(sim_weight, axis=-1, keepdims=True)
    ew = jnp.exp((sim_weight - rowmax) * (1.0 / knn_t))           # (B, K) f32

    pred_scores = knn_scores(ew.T, sim_labels.T,
                             num_classes=num_classes)             # (B, C) f32

    # TODO(synk): descending argsort stays in plain JAX (no Pallas sort).
    return jnp.argsort(-pred_scores, axis=-1)                     # (B, C) i32


class KNNClassifier:
    """JAX/Pallas port of the PyTorch KNNClassifier (fit + forward)."""

    def __init__(self, num_classes, knn_k=200, knn_t=0.1):
        self.num_classes = int(num_classes)
        self.knn_k = int(knn_k)
        self.knn_t = float(knn_t)
        self._xt_bf16 = None
        self._y_train = None
        self._forward = None

    def fit(self, x_train, y_train):
        xt = jnp.asarray(x_train, jnp.float32)
        n, d = xt.shape
        n_pad, d_pad = _round_up(n, 128), _round_up(d, 128)
        if (n_pad, d_pad) != (n, d):
            xt = jnp.pad(xt, ((0, n_pad - n), (0, d_pad - d)))
        # One-time bf16 cast + padding, cached: every forward streams this
        # directly (half the HBM bytes of f32, no per-call cast of (N, D)).
        self._xt_bf16 = jax.block_until_ready(xt.astype(jnp.bfloat16))
        self._y_train = jnp.asarray(y_train, jnp.int32)
        self._forward = jax.jit(functools.partial(
            _knn_forward,
            num_classes=self.num_classes,
            knn_k=self.knn_k,
            knn_t=self.knn_t,
            n_train=n,
        ))
        return self

    def __call__(self, x):
        assert self._xt_bf16 is not None, "call fit first"
        return self._forward(jnp.asarray(x, jnp.float32),
                             self._xt_bf16, self._y_train)


if __name__ == "__main__":
    key = jax.random.PRNGKey(0)
    # TODO(synk): at real eval sizes, batch many more queries per call (B>=256)
    # so the similarity matmul stops being purely HBM-bound.
    B, D, N, C, K = 8, 128, 256, 16, 64   # batch, feat dim, train set, classes, knn_k
    knn_t = 0.1

    kx, kt, ky = jax.random.split(key, 3)
    x = jax.random.normal(kx, (B, D), dtype=jnp.float32)
    x_train = jax.random.normal(kt, (N, D), dtype=jnp.float32)
    y_train = jax.random.randint(ky, (N,), 0, C, dtype=jnp.int32)

    clf = KNNClassifier(num_classes=C, knn_k=K, knn_t=knn_t).fit(x_train, y_train)

    # --- component check 1: similarity kernel vs high-precision reference ---
    sim_k = similarity_matrix(x.astype(jnp.bfloat16), clf._xt_bf16)[:, :N]
    sim_ref = lax.dot_general(
        x.astype(jnp.bfloat16).astype(jnp.float32),
        x_train.astype(jnp.bfloat16).astype(jnp.float32),
        dimension_numbers=(((1,), (1,)), ((), ())),
        precision=lax.Precision.HIGHEST,
    )
    assert jnp.allclose(sim_k, sim_ref, rtol=2e-3, atol=2e-3)

    # --- component check 2: score kernel vs one-hot einsum reference ---------
    ew_t = jax.random.uniform(kx, (K, B), jnp.float32) + 0.5
    lbl_t = jax.random.randint(ky, (K, B), 0, C, dtype=jnp.int32)
    sc_k = knn_scores(ew_t, lbl_t, num_classes=C)
    sc_ref = jnp.einsum("kb,kbc->bc", ew_t,
                        jax.nn.one_hot(lbl_t, C, dtype=jnp.float32))
    assert jnp.allclose(sc_k, sc_ref, rtol=1e-4, atol=1e-4)

    # --- full forward ---------------------------------------------------------
    pred_labels = clf(x)
    jax.block_until_ready(pred_labels)
    assert pred_labels.shape == (B, C)
    assert bool(jnp.all(jnp.sort(pred_labels, axis=-1) == jnp.arange(C)[None, :]))
    print("KERNEL_OK")
</pallas_src>

<mosaic_0001>
module attributes {stable_mosaic.version = 11 : i64} {
  func.func @_sim_kernel(%arg0: i32, %arg1: i32, %arg2: memref<1x8x128xbf16, #tpu.memory_space<vmem>>, %arg3: memref<128x128xbf16, #tpu.memory_space<vmem>>, %arg4: memref<8x128xf32, #tpu.memory_space<vmem>>) attributes {dimension_semantics = [#tpu.dimension_semantics<parallel>, #tpu.dimension_semantics<arbitrary>], iteration_bounds = array<i64: 2, 1>, scalar_prefetch = 0 : i64, scratch_operands = 0 : i64, tpu.core_type = #tpu.core_type<tc>, window_params = [{pipeline_mode = #tpu.pipeline_mode<synchronous>, transform_indices = @transform_0, window_bounds = array<i64: 1, 8, 128>}, {transform_indices = @transform_1, window_bounds = array<i64: 128, 128>}, {transform_indices = @transform_2, window_bounds = array<i64: 8, 128>}]} {
    %c0_i32 = arith.constant 0 : i32
    %0 = arith.cmpi eq, %arg1, %c0_i32 : i32
    %1 = arith.extui %0 : i1 to i32
    %c0_i32_0 = arith.constant 0 : i32
    %2 = arith.cmpi ne, %1, %c0_i32_0 : i32
    scf.if %2 {
      %cst_8 = arith.constant 0.000000e+00 : f32
      %11 = vector.broadcast %cst_8 : f32 to vector<8x128xf32>
      %c0_9 = arith.constant 0 : index
      %c0_10 = arith.constant 0 : index
      %12 = vector.load %arg4[%c0_9, %c0_10] : memref<8x128xf32, #tpu.memory_space<vmem>>, vector<8x128xf32>
      tpu.vector_store %arg4[%c0_9, %c0_10], %11 {strides = array<i32>} : memref<8x128xf32, #tpu.memory_space<vmem>>, vector<8x128xf32>,
    } else {
    }
    %c0 = arith.constant 0 : index
    %c0_1 = arith.constant 0 : index
    %3 = vector.load %arg4[%c0, %c0_1] : memref<8x128xf32, #tpu.memory_space<vmem>>, vector<8x128xf32>
    %4 = arith.index_cast %arg1 : i32 to index
    %c0_2 = arith.constant 0 : index
    %c0_3 = arith.constant 0 : index
    %5 = vector.load %arg2[%4, %c0_2, %c0_3] : memref<1x8x128xbf16, #tpu.memory_space<vmem>>, vector<1x8x128xbf16>
    %6 = vector.shape_cast %5 : vector<1x8x128xbf16> to vector<8x128xbf16>
    %c0_4 = arith.constant 0 : index
    %c0_5 = arith.constant 0 : index
    %7 = vector.load %arg3[%c0_4, %c0_5] : memref<128x128xbf16, #tpu.memory_space<vmem>>, vector<128x128xbf16>
    %cst = arith.constant dense<0.000000e+00> : vector<8x128xf32>
    %8 = tpu.matmul %6, %7, %cst {dimension_numbers = #tpu.dot_dimension_numbers<[1], [1], [0], [0], [0, 0, 1, 0], [], []>} : vector<8x128xbf16>, vector<128x128xbf16>, vector<8x128xf32> -> vector<8x128xf32>
    %9 = arith.addf %3, %8 : vector<8x128xf32>
    %c0_6 = arith.constant 0 : index
    %c0_7 = arith.constant 0 : index
    %10 = vector.load %arg4[%c0_6, %c0_7] : memref<8x128xf32, #tpu.memory_space<vmem>>, vector<8x128xf32>
    tpu.vector_store %arg4[%c0_6, %c0_7], %9 {strides = array<i32>} : memref<8x128xf32, #tpu.memory_space<vmem>>, vector<8x128xf32>,
    return
  }
  func.func @transform_0(%arg0: i32, %arg1: i32) -> (i32, i32, i32) {
    %c0_i32 = arith.constant 0 : i32
    %c0_i32_0 = arith.constant 0 : i32
    %c0_i32_1 = arith.constant 0 : i32
    %c0_i32_2 = arith.constant 0 : i32
    return %c0_i32, %c0_i32_0, %c0_i32_1 : i32, i32, i32
  }
  func.func @transform_1(%arg0: i32, %arg1: i32) -> (i32, i32) {
    %c0_i32 = arith.constant 0 : i32
    return %arg0, %arg1 : i32, i32
  }
  func.func @transform_2(%arg0: i32, %arg1: i32) -> (i32, i32) {
    %c0_i32 = arith.constant 0 : i32
    %c0_i32_0 = arith.constant 0 : i32
    return %c0_i32, %arg0 : i32, i32
  }
}

</mosaic_0001>

<llo_original>
// kernel: tpu_custom_call.1
$region0: #{tpu_custom_call.1}
  #allocation0 [shape = 'u32[]', space=smem, size = 0x4, offset = 0x4, fixed_abs, tag = 'smem constant byte address 0x4 - core index']
  #allocation1 [shape = 'u32[144,128]{1,0:T(1,128)}', space=vmem, size = 0x12000, scoped, tag = 'internal scratch']
  %s0 = inlined_call_operand.hbm [shape: bf16[1,8,128], index: 0, kind: input, shape index: {}]
  %s1 = inlined_call_operand.hbm [shape: bf16[256,128], index: 1, kind: input, shape index: {}]
  %s2 = inlined_call_operand.hbm [shape: f32[8,256], index: 2, kind: output, shape index: {}]
  %s3 = sld [smem:[#allocation0]]
  $region53: #{tpu_custom_call.1} parent=0
    _
  %s5 = ssub.s32 1, %s3
  %s6 = scalar_select 0, %s5, %s3
  $region1: #{tpu_custom_call.1} parent=0
    #allocation2 [shape = 'u8[2048]{0}', space=vmem, size = 0x800, scoped, tag = 'input window, operand 0, single buffered']
    #allocation3 [shape = 's32[2]{0}', space=sflag, size = 0x8, scoped, tag = 'scoped memory for tpu_custom_call.1']
    #allocation4 [shape = 's32[2]{0}', space=sflag, size = 0x8, scoped, tag = 'scoped memory for tpu_custom_call.1']
    #allocation5 [shape = 'u8[65536]{0}', space=vmem, size = 0x10000, scoped, tag = 'input window, operand 1']
    #allocation6 [shape = 's32[2]{0}', space=sflag, size = 0x8, scoped, tag = 'scoped memory for tpu_custom_call.1']
    #allocation7 [shape = 'u8[8192]{0}', space=vmem, size = 0x2000, scoped, tag = 'output window, operand 0']
    %7 = vsyncpa [#allocation3], 0
    %8 = vsyncpa [#allocation6], 0
    %s9 = scalar_lea.sflag [#allocation6], 1
    %10 = vsyncpa %s9, 0
    %11 = vsyncpa [#allocation4], 0
    %s12 = scalar_lea.sflag [#allocation4], 1
    %13 = vsyncpa %s12, 0
    loop: start=0, step=1, limit=4
    $region2: #{tpu_custom_call.1} parent=1 // loop_pre_header
      _
    $region3: #{tpu_custom_call.1} parent=1 // loop_header
      %s15 = sphi 0, %s19
      %p16 = scmp.ge.s32.totalorder %s15, 4
      %s22 = sphi 0, %s34
      %s23 = sphi 0, %s30
      %s24 = sphi 0, %s22
      %s25 = sphi 0, %s23
      %s26 = sphi 0, %s24
      %s27 = sphi 0, %s25
      %s35 = sphi 0, %s35
      %s37 = sphi 0, %s35
      %s38 = sphi 0, %s37
      %s52 = sphi 0, %s38
      %s60 = sphi 0, %s62
      %s63 = sphi 0, %s60
      %s64 = sphi 0, %s63
      %s80 = sphi 0, %s64
      %s86 = sphi 0, %s88
      %s89 = sphi 0, %s86
      %s90 = sphi 0, %s89
      %s106 = sphi 0, %s90
    $region4: #{tpu_custom_call.1} parent=1 // loop_header_branch
      %18 = sbr.rel (%p16) target = $region8
    $region5: #{tpu_custom_call.1} parent=1 // loop_body
      %s20 = ssub.s32 %s15, 1
      %s21 = ssub.s32 %s15, 2
      %s28 = sadd.s32 1, %s23
      %p29 = scmp.ge.s32.totalorder %s28, 1
      %s30 = scalar_select %p29, 0, %s28
      %s31 = sadd.s32 1, %s22
      %s32 = scalar_select %p29, %s31, %s22
      %p33 = scmp.ge.s32.totalorder %s32, 2
      %s34 = scalar_select %p33, 0, %s32
      %s36 = sadd.s32 %s35, 1
      %p39 = scmp.eq.s32.totalorder %s15, 1
      %p40 = scmp.ne.s32.totalorder %s35, %s37
      %p41 = scmp.eq.s32.totalorder %s15, 0
      %p42 = por %p40, %p41
      %p43 = scmp.ne.s32.totalorder %s35, %s37
      %p44 = scmp.eq.s32.totalorder %s20, 1
      %p45 = por %p43, %p44
      %p46 = scmp.ne.s32.totalorder %s37, %s38
      %p47 = scmp.eq.s32.totalorder %s20, 0
      %p48 = por %p46, %p47
      %p49 = scmp.ne.s32.totalorder %s37, %s38
      %p50 = scmp.eq.s32.totalorder %s21, 1
      %p51 = por %p49, %p50
      %p53 = scmp.ne.s32.totalorder %s38, %s52
      %p54 = scmp.eq.s32.totalorder %s21, 0
      %p55 = por %p53, %p54
      %s56 = ssub.s32 %s22, %s34
      %s57 = ssub.s32 %s23, %s30
      %s58 = sor.u32 %s56, %s57
      %p59 = scmp.eq.s32.totalorder %s58, 0
      %s61 = sadd.s32 %s60, 1
      %s62 = scalar_select %p59, %s60, %s61
      %p65 = pneg %p59
      %p66 = scmp.eq.s32.totalorder %s15, 1
      %p67 = por %p65, %p66
      %p68 = scmp.ne.s32.totalorder %s60, %s63
      %p69 = scmp.eq.s32.totalorder %s15, 0
      %p70 = por %p68, %p69
      %p71 = scmp.ne.s32.totalorder %s60, %s63
      %p72 = scmp.eq.s32.totalorder %s20, 1
      %p73 = por %p71, %p72
      %p74 = scmp.ne.s32.totalorder %s63, %s64
      %p75 = scmp.eq.s32.totalorder %s20, 0
      %p76 = por %p74, %p75
      %p77 = scmp.ne.s32.totalorder %s63, %s64
      %p78 = scmp.eq.s32.totalorder %s21, 1
      %p79 = por %p77, %p78
      %p81 = scmp.ne.s32.totalorder %s64, %s80
      %p82 = scmp.eq.s32.totalorder %s21, 0
      %p83 = por %p81, %p82
      %s84 = ssub.s32 %s22, %s34
      %p85 = scmp.eq.s32.totalorder %s84, 0
      %s87 = sadd.s32 %s86, 1
      %s88 = scalar_select %p85, %s86, %s87
      %p91 = pneg %p85
      %p92 = scmp.eq.s32.totalorder %s15, 1
      %p93 = por %p91, %p92
      %p94 = scmp.ne.s32.totalorder %s86, %s89
      %p95 = scmp.eq.s32.totalorder %s15, 0
      %p96 = por %p94, %p95
      %p97 = scmp.ne.s32.totalorder %s86, %s89
      %p98 = scmp.eq.s32.totalorder %s20, 1
      %p99 = por %p97, %p98
      %p100 = scmp.ne.s32.totalorder %s89, %s90
      %p101 = scmp.eq.s32.totalorder %s20, 0
      %p102 = por %p100, %p101
      %p103 = scmp.ne.s32.totalorder %s89, %s90
      %p104 = scmp.eq.s32.totalorder %s21, 1
      %p105 = por %p103, %p104
      %p107 = scmp.ne.s32.totalorder %s90, %s106
      %p108 = scmp.eq.s32.totalorder %s21, 0
      %p109 = por %p107, %p108
      %p110 = scmp.le.s32.totalorder 1, %s15
      %p111 = scmp.lt.s32.totalorder %s15, 3
      %p112 = pnand %p110, %p111
      %p113 = pneg %p112
      // Predicated region
      $region9: #{tpu_custom_call.1} parent=5 // pred_check
        _
      $region10: #{tpu_custom_call.1} parent=5 // pred_check_branch
        %115 = sbr.rel (%p112) target = $region12
      $region11: #{tpu_custom_call.1} parent=5 // pred_region
        %s116 = ssub.s32 %s15, 1
        // Predicated region
        $region13: #{tpu_custom_call.1} parent=11 // pred_check
          %p117 = pneg %p48
        $region14: #{tpu_custom_call.1} parent=11 // pred_check_branch
          %119 = sbr.rel (%p117) target = $region16
        $region15: #{tpu_custom_call.1} parent=11 // pred_region
          %s121 = ssub.s32 64, 64
          %122 = vsyncadd [#allocation3], %s121
          %s124 = sshll.u32 [#allocation2], 4
          %s125 = int_to_ptr.vmem [resolvable:$true] %s124
          %127 = dma.hbm_to_vmem [thread:$0]  %s0, 64, %s125, [#allocation3]
        $region16: #{tpu_custom_call.1} parent=11 // pred_fallthru
          _
      $region12: #{tpu_custom_call.1} parent=5 // pred_fallthru
        _
      %p128 = scmp.lt.s32.totalorder %s15, 2
      // Predicated region
      $region17: #{tpu_custom_call.1} parent=5 // pred_check
        %p129 = pneg %p128
      $region18: #{tpu_custom_call.1} parent=5 // pred_check_branch
        %131 = sbr.rel (%p129) target = $region20
      $region19: #{tpu_custom_call.1} parent=5 // pred_region
        // Predicated region
        $region21: #{tpu_custom_call.1} parent=19 // pred_check
          %p132 = pneg %p70
        $region22: #{tpu_custom_call.1} parent=19 // pred_check_branch
          %134 = sbr.rel (%p132) target = $region24
        $region23: #{tpu_custom_call.1} parent=19 // pred_region
          %s135 = sand.u32 %s60, 1
          %s136 = scalar_lea.sflag [#allocation6], %s135
          %s137 = sand.u32 %s60, 1
          %s138 = smul.addr %s137, 64
          %s139 = scalar_lea.vmem [#allocation5], %s138
          %s140 = smul.u32 16, %s22
          %s142 = ssub.s32 1024, 1024
          %143 = vsyncadd %s136, %s142
          %s144 = sadd.s32 %s23, %s140
          %s145 = smul.addr %s144, 64
          %s146 = scalar_lea.hbm %s1, %s145
          %s147 = sshll.u32 %s139, 4
          %s148 = int_to_ptr.vmem [resolvable:$true] %s147
          %153 = dma.hbm_to_vmem [thread:$0]  %s146, 1024, %s148, %s136, 64, 64, 4
        $region24: #{tpu_custom_call.1} parent=19 // pred_fallthru
          _
      $region20: #{tpu_custom_call.1} parent=5 // pred_fallthru
        _
      %p154 = scmp.le.s32.totalorder 1, %s15
      %p155 = scmp.lt.s32.totalorder %s15, 3
      %p156 = pnand %p154, %p155
      %p157 = pneg %p156
      // Predicated region
      $region25: #{tpu_custom_call.1} parent=5 // pred_check
        _
      $region26: #{tpu_custom_call.1} parent=5 // pred_check_branch
        %159 = sbr.rel (%p156) target = $region28
      $region27: #{tpu_custom_call.1} parent=5 // pred_region
        %s160 = ssub.s32 %s15, 1
        // Predicated region
        $region29: #{tpu_custom_call.1} parent=27 // pred_check
          %p161 = pneg %p48
        $region30: #{tpu_custom_call.1} parent=27 // pred_check_branch
          %163 = sbr.rel (%p161) target = $region32
        $region31: #{tpu_custom_call.1} parent=27 // pred_region
          %164 = dma.done [#allocation3], 64
        $region32: #{tpu_custom_call.1} parent=27 // pred_fallthru
          _
        %s165 = sand.u32 %s63, 1
        %s166 = scalar_lea.sflag [#allocation6], %s165
        %s167 = sand.u32 %s63, 1
        %s168 = smul.addr %s167, 64
        %s169 = scalar_lea.vmem [#allocation5], %s168
        // Predicated region
        $region33: #{tpu_custom_call.1} parent=27 // pred_check
          %p170 = pneg %p76
        $region34: #{tpu_custom_call.1} parent=27 // pred_check_branch
          %172 = sbr.rel (%p170) target = $region36
        $region35: #{tpu_custom_call.1} parent=27 // pred_region
          %173 = dma.done %s166, 1024
        $region36: #{tpu_custom_call.1} parent=27 // pred_fallthru
          _
        %p174 = pneg %p48
        %p175 = pneg %p45
        %s176 = sand.u32 %s63, 1
        %s177 = scalar_lea.sflag [#allocation6], %s176
        %s178 = sand.u32 %s63, 1
        %s179 = smul.addr %s178, 64
        %s180 = scalar_lea.vmem [#allocation5], %s179
        %p181 = pneg %p76
        %p182 = pneg %p73
        %p183 = pneg %p102
        %p184 = pneg %p99
        %s185 = sand.u32 %s89, 1
        %s186 = scalar_lea.sflag [#allocation4], %s185
        %s187 = sand.u32 %s89, 1
        %s188 = smul.addr %s187, 8
        %s189 = scalar_lea.vmem [#allocation7], %s188
        %s190 = smul.u32 16, %s24
        %p192 = scmp.eq.s32.totalorder %s25, 0
        // Predicated region
        $region37: #{tpu_custom_call.1} parent=27 // pred_check
          %p193 = pneg %p192
        $region38: #{tpu_custom_call.1} parent=27 // pred_check_branch
          %195 = sbr.rel (%p193) target = $region40
        $region39: #{tpu_custom_call.1} parent=27 // pred_region
          %196 = vst [vmem:[%s189] sm:$0xff] 0.0
        $region40: #{tpu_custom_call.1} parent=27 // pred_fallthru
          _
        %v197 = vld [vmem:[%s189] sm:$0xff]
        %s198 = smul.addr %s25, 4
        %s199 = scalar_lea.vmem [#allocation2], %s198
        %v200 = vld [vmem:[%s199] sm:$0xf]
        %v201 = vld [vmem:[%s169] sm:$0xf]
        %v202 = vld [vmem:[%s169 + $0x4] sm:$0xf]
        %v203 = vld [vmem:[%s169 + $0x8] sm:$0xf]
        %v204 = vld [vmem:[%s169 + $0xc] sm:$0xf]
        %v205 = vld [vmem:[%s169 + $0x10] sm:$0xf]
        %v206 = vld [vmem:[%s169 + $0x14] sm:$0xf]
        %v207 = vld [vmem:[%s169 + $0x18] sm:$0xf]
        %v208 = vld [vmem:[%s169 + $0x1c] sm:$0xf]
        %v209 = vld [vmem:[%s169 + $0x20] sm:$0xf]
        %v210 = vld [vmem:[%s169 + $0x24] sm:$0xf]
        %v211 = vld [vmem:[%s169 + $0x28] sm:$0xf]
        %v212 = vld [vmem:[%s169 + $0x2c] sm:$0xf]
        %v213 = vld [vmem:[%s169 + $0x30] sm:$0xf]
        %v214 = vld [vmem:[%s169 + $0x34] sm:$0xf]
        %v215 = vld [vmem:[%s169 + $0x38] sm:$0xf]
        %v216 = vld [vmem:[%s169 + $0x3c] sm:$0xf]
        %v233 = vunpack.c.l.b16 %v201
        %v234 = vunpack.c.l.b16 %v202
        %v235 = vunpack.c.l.b16 %v203
        %v236 = vunpack.c.l.b16 %v204
        %v237 = vunpack.c.l.b16 %v205
        %v238 = vunpack.c.l.b16 %v206
        %v239 = vunpack.c.l.b16 %v207
        %v240 = vunpack.c.l.b16 %v208
        %v241 = vunpack.c.l.b16 %v209
        %v242 = vunpack.c.l.b16 %v210
        %v243 = vunpack.c.l.b16 %v211
        %v244 = vunpack.c.l.b16 %v212
        %v245 = vunpack.c.l.b16 %v213
        %v246 = vunpack.c.l.b16 %v214
        %v247 = vunpack.c.l.b16 %v215
        %v248 = vunpack.c.l.b16 %v216
        %v249 = vpack.c.b16 %v234, %v233
        %v250 = vpack.c.b16 %v236, %v235
        %v251 = vpack.c.b16 %v238, %v237
        %v252 = vpack.c.b16 %v240, %v239
        %v253 = vpack.c.b16 %v242, %v241
        %v254 = vpack.c.b16 %v244, %v243
        %v255 = vpack.c.b16 %v246, %v245
        %v256 = vpack.c.b16 %v248, %v247
        %265 = vmatprep.subr.bf16.mxu0 0
        %266 = vmatpush1.bf16.xpose.msra.mxu0 %v249
        %267 = vmatprep.subr.bf16.mxu0 0
        %268 = vmatpush1.bf16.xpose.msra.mxu0 %v250
        %269 = vmatprep.subr.bf16.mxu0 0
        %270 = vmatpush1.bf16.xpose.msra.mxu0 %v251
        %271 = vmatprep.subr.bf16.mxu0 0
        %272 = vmatpush1.bf16.xpose.msra.mxu0 %v252
        %273 = vmatprep.subr.bf16.mxu0 0
        %274 = vmatpush1.bf16.xpose.msra.mxu0 %v253
        %275 = vmatprep.subr.bf16.mxu0 0
        %276 = vmatpush1.bf16.xpose.msra.mxu0 %v254
        %277 = vmatprep.subr.bf16.mxu0 0
        %278 = vmatpush1.bf16.xpose.msra.mxu0 %v255
        %279 = vmatprep.subr.bf16.mxu0 0
        %280 = vmatpush1.bf16.xpose.msra.mxu0 %v256
        %281 = vmatprep.subr.bf16.mxu0 0
        %282 = vmatpush1.bf16.xpose.msra.mxu0 0
        %283 = vmatprep.subr.bf16.mxu0 0
        %284 = vmatpush1.bf16.xpose.msra.mxu0 0
        %285 = vmatprep.subr.bf16.mxu0 0
        %286 = vmatpush1.bf16.xpose.msra.mxu0 0
        %287 = vmatprep.subr.bf16.mxu0 0
        %288 = vmatpush1.bf16.xpose.msra.mxu0 0
        %289 = vmatprep.subr.bf16.mxu0 0
        %290 = vmatpush1.bf16.xpose.msra.mxu0 0
        %291 = vmatprep.subr.bf16.mxu0 0
        %292 = vmatpush1.bf16.xpose.msra.mxu0 0
        %293 = vmatprep.subr.bf16.mxu0 0
        %294 = vmatpush1.bf16.xpose.msra.mxu0 0
        %295 = vmatprep.subr.bf16.mxu0 0
        %296 = vmatpush1.bf16.xpose.msra.mxu0 0
        %297 = vmatprep.mubr.bf16.mxu0 0
        %298 = vmatmul.mubr.bf16.gmra.mrb[0].mxu0 %v200
        %v299 = vpop.f32.mrb[0].mxu0
        %v300 = vadd.f32 0.0, %v299
        %v301 = vpop.f32.mrb[0].mxu0
        %v302 = vpop.f32.mrb[0].mxu0
        %v303 = vpop.f32.mrb[0].mxu0
        %304 = vdwg.mxu0
        %v305 = vadd.f32 %v197, %v300
        %306 = vst [vmem:[%s189] sm:$0xff] %v305
        %s307 = sand.u32 %s89, 1
        %s308 = scalar_lea.sflag [#allocation4], %s307
        %s309 = sand.u32 %s89, 1
        %s310 = smul.addr %s309, 8
        %s311 = scalar_lea.vmem [#allocation7], %s310
        // Predicated region
        $region41: #{tpu_custom_call.1} parent=27 // pred_check
          %p312 = pneg %p99
        $region42: #{tpu_custom_call.1} parent=27 // pred_check_branch
          %314 = sbr.rel (%p312) target = $region44
        $region43: #{tpu_custom_call.1} parent=27 // pred_region
          %s316 = ssub.s32 128, 128
          %317 = vsyncadd %s308, %s316
          %s318 = smul.addr %s24, 128
          %s319 = scalar_lea.hbm %s2, %s318
          %s321 = sshll.u32 %s311, 4
          %s322 = int_to_ptr.vmem [resolvable:$true] %s321
          %324 = dma.vmem_to_hbm [thread:$0]  %s322, 128, %s319, %s308
        $region44: #{tpu_custom_call.1} parent=27 // pred_fallthru
          _
      $region28: #{tpu_custom_call.1} parent=5 // pred_fallthru
        _
      %p325 = scmp.le.s32.totalorder 2, %s15
      // Predicated region
      $region45: #{tpu_custom_call.1} parent=5 // pred_check
        %p326 = pneg %p325
      $region46: #{tpu_custom_call.1} parent=5 // pred_check_branch
        %328 = sbr.rel (%p326) target = $region48
      $region47: #{tpu_custom_call.1} parent=5 // pred_region
        %s329 = ssub.s32 %s15, 2
        // Predicated region
        $region49: #{tpu_custom_call.1} parent=47 // pred_check
          %p330 = pneg %p105
        $region50: #{tpu_custom_call.1} parent=47 // pred_check_branch
          %332 = sbr.rel (%p330) target = $region52
        $region51: #{tpu_custom_call.1} parent=47 // pred_region
          %s333 = sand.u32 %s90, 1
          %s334 = scalar_lea.sflag [#allocation4], %s333
          %s335 = sand.u32 %s90, 1
          %s336 = smul.addr %s335, 8
          %s337 = scalar_lea.vmem [#allocation7], %s336
          %338 = dma.done %s334, 128
        $region52: #{tpu_custom_call.1} parent=47 // pred_fallthru
          _
      $region48: #{tpu_custom_call.1} parent=5 // pred_fallthru
        _
    $region6: #{tpu_custom_call.1} parent=1 // loop_footer
      %s19 = sadd.s32 1, %s15
    $region7: #{tpu_custom_call.1} parent=1 // loop_footer_branch
      %14 = sbr.rel target = $region3
    $region8: #{tpu_custom_call.1} parent=1 // loop_exit
      _
    %339 = vsyncpa [#allocation3], 1
    %s340 = scalar_lea.sflag [#allocation3], 1
    %341 = vsyncpa %s340, 1
    %342 = vsyncpa [#allocation6], 1
    %s343 = scalar_lea.sflag [#allocation6], 1
    %344 = vsyncpa %s343, 1
    %345 = vsyncpa [#allocation4], 1
    %s346 = scalar_lea.sflag [#allocation4], 1
    %347 = vsyncpa %s346, 1

</llo_original>
